<compile_context>
chip_gen: v5e
topology: v5e:2x2
jax: 0.10.0
libtpu: 0.0.40
codegen_flags: <defaults>
</compile_context>

<pallas_src>
import jax
import jax.numpy as jnp
from jax import lax
from jax.experimental import pallas as pl
from jax.experimental.pallas import tpu as pltpu


def _round_up(x: int, m: int) -> int:
    return (x + m - 1) // m * m


# ---------------------------------------------------------------------------
# Stage 1: build the effective dense weight matrix W_eff (K_pad, N_pad).
# Duplicate indices accumulate; padded columns carry w == 0 so they stay zero.
# ---------------------------------------------------------------------------
def _build_weff_kernel(idx_ref, w_ref, weff_ref):
    # idx_ref / w_ref: (n_npb, tn)   weff_ref: (tk, tn)
    n_npb = idx_ref.shape[0]
    tk, tn = weff_ref.shape

    row_base = pl.program_id(0) * tk
    row_iota = lax.broadcasted_iota(jnp.int32, (tk, tn), 0) + row_base

    idx = idx_ref[...]
    w = w_ref[...]

    acc = jnp.zeros((tk, tn), jnp.float32)
    for k in range(n_npb):  # n_npb is a small static hyperparameter; unrolled
        acc = acc + jnp.where(row_iota == idx[k:k + 1, :], w[k:k + 1, :], 0.0)

    weff_ref[...] = acc


# ---------------------------------------------------------------------------
# Stage 2: tiled MXU matmul  out = x @ W_eff.
# ---------------------------------------------------------------------------
def _matmul_kernel_single_k(x_ref, w_ref, o_ref):
    # Whole contraction fits one K tile: no accumulator scratch needed.
    o_ref[...] = jnp.dot(x_ref[...], w_ref[...],
                         preferred_element_type=jnp.float32)


def _matmul_kernel_multi_k(x_ref, w_ref, o_ref, acc_ref):
    @pl.when(pl.program_id(2) == 0)
    def _():
        acc_ref[...] = jnp.zeros_like(acc_ref)

    acc_ref[...] += jnp.dot(x_ref[...], w_ref[...],
                            preferred_element_type=jnp.float32)
    o_ref[...] = acc_ref[...].astype(o_ref.dtype)


def branch_layer_forward(x, idx, w, n_b, n_next_h, *,
                         max_batch_tile=512, max_n_tile=512, max_k_tile=512):
    batch, n_in = x.shape
    n_npb, n_cols = idx.shape
    assert n_cols == n_b * n_next_h

    # Padded / tiled sizes: 128-aligned K and N, 8-aligned batch tile.
    k_pad = _round_up(n_in, 128)
    n_pad = _round_up(n_cols, 128)
    tb = min(max_batch_tile, _round_up(batch, 8))
    b_pad = _round_up(batch, tb)
    tn = min(max_n_tile, n_pad)
    tk = min(max_k_tile, k_pad)

    # Zero-pad inputs/params (zero pads contribute nothing to the matmul).
    xp = jnp.pad(x.astype(jnp.float32),
                 ((0, b_pad - batch), (0, k_pad - n_in)))
    idx_p = jnp.pad(idx.astype(jnp.int32), ((0, 0), (0, n_pad - n_cols)))
    w_p = jnp.pad(w.astype(jnp.float32), ((0, 0), (0, n_pad - n_cols)))

    # ---- Stage 1: W_eff built once (hoisted out of the batch grid loop). ----
    w_eff = pl.pallas_call(
        _build_weff_kernel,
        out_shape=jax.ShapeDtypeStruct((k_pad, n_pad), jnp.float32),
        grid=(k_pad // tk, n_pad // tn),
        in_specs=[
            pl.BlockSpec((n_npb, tn), lambda i, j: (0, j)),
            pl.BlockSpec((n_npb, tn), lambda i, j: (0, j)),
        ],
        out_specs=pl.BlockSpec((tk, tn), lambda i, j: (i, j)),
        compiler_params=pltpu.CompilerParams(
            dimension_semantics=("parallel", "parallel")),
    )(idx_p, w_p)

    # ---- Stage 2: out = x @ W_eff (pure MXU work per tile). ----
    cost = pl.CostEstimate(
        flops=2 * b_pad * k_pad * n_pad,
        transcendentals=0,
        bytes_accessed=4 * (b_pad * k_pad + k_pad * n_pad + b_pad * n_pad),
    )

    k_steps = k_pad // tk
    if k_steps == 1:
        out_flat = pl.pallas_call(
            _matmul_kernel_single_k,
            out_shape=jax.ShapeDtypeStruct((b_pad, n_pad), jnp.float32),
            grid=(b_pad // tb, n_pad // tn),
            in_specs=[
                pl.BlockSpec((tb, tk), lambda i, j: (i, 0)),
                pl.BlockSpec((tk, tn), lambda i, j: (0, j)),
            ],
            out_specs=pl.BlockSpec((tb, tn), lambda i, j: (i, j)),
            compiler_params=pltpu.CompilerParams(
                dimension_semantics=("parallel", "parallel")),
            cost_estimate=cost,
        )(xp, w_eff)
    else:
        out_flat = pl.pallas_call(
            _matmul_kernel_multi_k,
            out_shape=jax.ShapeDtypeStruct((b_pad, n_pad), jnp.float32),
            grid=(b_pad // tb, n_pad // tn, k_steps),
            in_specs=[
                pl.BlockSpec((tb, tk), lambda i, j, k: (i, k)),
                pl.BlockSpec((tk, tn), lambda i, j, k: (k, j)),
            ],
            out_specs=pl.BlockSpec((tb, tn), lambda i, j, k: (i, j)),
            scratch_shapes=[pltpu.VMEM((tb, tn), jnp.float32)],
            compiler_params=pltpu.CompilerParams(
                dimension_semantics=("parallel", "parallel", "arbitrary")),
            cost_estimate=cost,
        )(xp, w_eff)

    out = out_flat[:batch, :n_cols].reshape(batch, n_b, n_next_h)
    if n_b == 1:
        out = jnp.squeeze(out, axis=1)
    return out


def _reference_forward(x, idx, w, n_b, n_next_h):
    # pure-JAX mirror of the PyTorch forward, for sanity checking
    gathered = x[:, idx]                          # (batch, n_npb, n_cols)
    out = (gathered * w[None, :, :]).sum(axis=1)  # (batch, n_cols)
    out = out.reshape(-1, n_b, n_next_h)
    if n_b == 1:
        out = jnp.squeeze(out, axis=1)
    return out


if __name__ == "__main__":
    # Module hyperparameters (small, consistent with the forward).
    n_in = 32
    n_npb = 4
    n_b = 2
    n_next_h = 64
    batch = 16
    n_cols = n_b * n_next_h

    key = jax.random.PRNGKey(0)
    k_idx, k_w, k_x = jax.random.split(key, 3)

    # Deterministic "parameters": random branch indices + kaiming-uniform weights.
    idx = jax.random.randint(k_idx, (n_npb, n_cols), 0, n_in, dtype=jnp.int32)
    fan_in = n_cols  # torch 2-D kaiming fan_in = size(1)
    bound = (6.0 / fan_in) ** 0.5
    w = jax.random.uniform(k_w, (n_npb, n_cols), jnp.float32, -bound, bound)

    # Input.
    x = jax.random.normal(k_x, (batch, n_in), jnp.float32)

    out = branch_layer_forward(x, idx, w, n_b, n_next_h)
    out = jax.block_until_ready(out)

    ref = _reference_forward(x, idx, w, n_b, n_next_h)
    assert out.shape == (batch, n_b, n_next_h), out.shape
    assert jnp.allclose(out, ref, atol=1e-5, rtol=1e-5), "mismatch vs reference"

    print("KERNEL_OK")
</pallas_src>

<mosaic_0001>
module attributes {stable_mosaic.version = 11 : i64} {
  func.func @_build_weff_kernel(%arg0: i32, %arg1: i32, %arg2: memref<4x128xi32, #tpu.memory_space<vmem>>, %arg3: memref<4x128xf32, #tpu.memory_space<vmem>>, %arg4: memref<128x128xf32, #tpu.memory_space<vmem>>) attributes {dimension_semantics = [#tpu.dimension_semantics<parallel>, #tpu.dimension_semantics<parallel>], iteration_bounds = array<i64: 1, 1>, scalar_prefetch = 0 : i64, scratch_operands = 0 : i64, tpu.core_type = #tpu.core_type<tc>, window_params = [{transform_indices = @transform_0, window_bounds = array<i64: 4, 128>}, {transform_indices = @transform_1, window_bounds = array<i64: 4, 128>}, {transform_indices = @transform_2, window_bounds = array<i64: 128, 128>}]} {
    %c128_i32 = arith.constant 128 : i32
    %0 = arith.muli %arg0, %c128_i32 : i32
    %1 = tpu.iota {dimensions = array<i32: 0>} : vector<128x128xi32>
    %2 = vector.broadcast %0 : i32 to vector<128x128xi32>
    %3 = arith.addi %1, %2 : vector<128x128xi32>
    %c0 = arith.constant 0 : index
    %c0_0 = arith.constant 0 : index
    %4 = vector.load %arg2[%c0, %c0_0] : memref<4x128xi32, #tpu.memory_space<vmem>>, vector<4x128xi32>
    %c0_1 = arith.constant 0 : index
    %c0_2 = arith.constant 0 : index
    %5 = vector.load %arg3[%c0_1, %c0_2] : memref<4x128xf32, #tpu.memory_space<vmem>>, vector<4x128xf32>
    %cst = arith.constant 0.000000e+00 : f32
    %6 = vector.broadcast %cst : f32 to vector<128x128xf32>
    %7 = vector.extract_strided_slice %4 {offsets = [0, 0], sizes = [1, 128], strides = [1, 1]} : vector<4x128xi32> to vector<1x128xi32>
    %8 = vector.broadcast %7 : vector<1x128xi32> to vector<128x128xi32>
    %9 = arith.cmpi eq, %3, %8 : vector<128x128xi32>
    %10 = vector.extract_strided_slice %5 {offsets = [0, 0], sizes = [1, 128], strides = [1, 1]} : vector<4x128xf32> to vector<1x128xf32>
    %cst_3 = arith.constant 0.000000e+00 : f32
    %11 = vector.shape_cast %10 : vector<1x128xf32> to vector<1x128xf32>
    %12 = vector.broadcast %11 : vector<1x128xf32> to vector<128x128xf32>
    %13 = vector.broadcast %cst_3 : f32 to vector<128x128xf32>
    %14 = arith.select %9, %12, %13 : vector<128x128xi1>, vector<128x128xf32>
    %15 = arith.addf %6, %14 : vector<128x128xf32>
    %16 = vector.extract_strided_slice %4 {offsets = [1, 0], sizes = [1, 128], strides = [1, 1]} : vector<4x128xi32> to vector<1x128xi32>
    %17 = vector.broadcast %16 : vector<1x128xi32> to vector<128x128xi32>
    %18 = arith.cmpi eq, %3, %17 : vector<128x128xi32>
    %19 = vector.extract_strided_slice %5 {offsets = [1, 0], sizes = [1, 128], strides = [1, 1]} : vector<4x128xf32> to vector<1x128xf32>
    %cst_4 = arith.constant 0.000000e+00 : f32
    %20 = vector.shape_cast %19 : vector<1x128xf32> to vector<1x128xf32>
    %21 = vector.broadcast %20 : vector<1x128xf32> to vector<128x128xf32>
    %22 = vector.broadcast %cst_4 : f32 to vector<128x128xf32>
    %23 = arith.select %18, %21, %22 : vector<128x128xi1>, vector<128x128xf32>
    %24 = arith.addf %15, %23 : vector<128x128xf32>
    %25 = vector.extract_strided_slice %4 {offsets = [2, 0], sizes = [1, 128], strides = [1, 1]} : vector<4x128xi32> to vector<1x128xi32>
    %26 = vector.broadcast %25 : vector<1x128xi32> to vector<128x128xi32>
    %27 = arith.cmpi eq, %3, %26 : vector<128x128xi32>
    %28 = vector.extract_strided_slice %5 {offsets = [2, 0], sizes = [1, 128], strides = [1, 1]} : vector<4x128xf32> to vector<1x128xf32>
    %cst_5 = arith.constant 0.000000e+00 : f32
    %29 = vector.shape_cast %28 : vector<1x128xf32> to vector<1x128xf32>
    %30 = vector.broadcast %29 : vector<1x128xf32> to vector<128x128xf32>
    %31 = vector.broadcast %cst_5 : f32 to vector<128x128xf32>
    %32 = arith.select %27, %30, %31 : vector<128x128xi1>, vector<128x128xf32>
    %33 = arith.addf %24, %32 : vector<128x128xf32>
    %34 = vector.extract_strided_slice %4 {offsets = [3, 0], sizes = [1, 128], strides = [1, 1]} : vector<4x128xi32> to vector<1x128xi32>
    %35 = vector.broadcast %34 : vector<1x128xi32> to vector<128x128xi32>
    %36 = arith.cmpi eq, %3, %35 : vector<128x128xi32>
    %37 = vector.extract_strided_slice %5 {offsets = [3, 0], sizes = [1, 128], strides = [1, 1]} : vector<4x128xf32> to vector<1x128xf32>
    %cst_6 = arith.constant 0.000000e+00 : f32
    %38 = vector.shape_cast %37 : vector<1x128xf32> to vector<1x128xf32>
    %39 = vector.broadcast %38 : vector<1x128xf32> to vector<128x128xf32>
    %40 = vector.broadcast %cst_6 : f32 to vector<128x128xf32>
    %41 = arith.select %36, %39, %40 : vector<128x128xi1>, vector<128x128xf32>
    %42 = arith.addf %33, %41 : vector<128x128xf32>
    %c0_7 = arith.constant 0 : index
    %c0_8 = arith.constant 0 : index
    %43 = vector.load %arg4[%c0_7, %c0_8] : memref<128x128xf32, #tpu.memory_space<vmem>>, vector<128x128xf32>
    tpu.vector_store %arg4[%c0_7, %c0_8], %42 {strides = array<i32>} : memref<128x128xf32, #tpu.memory_space<vmem>>, vector<128x128xf32>,
    return
  }
  func.func @transform_0(%arg0: i32, %arg1: i32) -> (i32, i32) {
    %c0_i32 = arith.constant 0 : i32
    %c0_i32_0 = arith.constant 0 : i32
    return %c0_i32, %arg1 : i32, i32
  }
  func.func @transform_1(%arg0: i32, %arg1: i32) -> (i32, i32) {
    %c0_i32 = arith.constant 0 : i32
    %c0_i32_0 = arith.constant 0 : i32
    return %c0_i32, %arg1 : i32, i32
  }
  func.func @transform_2(%arg0: i32, %arg1: i32) -> (i32, i32) {
    %c0_i32 = arith.constant 0 : i32
    return %arg0, %arg1 : i32, i32
  }
}

</mosaic_0001>

<llo_original>
// kernel: tpu_custom_call.1
$region0: #{tpu_custom_call.1}
  #allocation0 [shape = 'u32[]', space=smem, size = 0x4, offset = 0x4, fixed_abs, tag = 'smem constant byte address 0x4 - core index']
  #allocation1 [shape = 'u32[72,128]{1,0:T(1,128)}', space=vmem, size = 0x9000, scoped, tag = 'internal scratch']
  %s0 = inlined_call_operand.hbm [shape: s32[4,128], index: 0, kind: input, shape index: {}]
  %s1 = inlined_call_operand.hbm [shape: f32[4,128], index: 1, kind: input, shape index: {}]
  %s2 = inlined_call_operand.hbm [shape: f32[128,128], index: 2, kind: output, shape index: {}]
  %s3 = sld [smem:[#allocation0]]
  $region26: #{tpu_custom_call.1} parent=0
    _
  %s5 = ssub.s32 1, %s3
  %s6 = scalar_select 0, %s5, %s3
  $region1: #{tpu_custom_call.1} parent=0
    #allocation2 [shape = 'u8[2048]{0}', space=vmem, size = 0x800, scoped, tag = 'input window, operand 0, single buffered']
    #allocation3 [shape = 's32[1]{0}', space=sflag, size = 0x4, scoped, tag = 'scoped memory for tpu_custom_call.1']
    #allocation4 [shape = 's32[1]{0}', space=sflag, size = 0x4, scoped, tag = 'scoped memory for tpu_custom_call.1']
    #allocation5 [shape = 'u8[2048]{0}', space=vmem, size = 0x800, scoped, tag = 'input window, operand 1, single buffered']
    #allocation6 [shape = 's32[1]{0}', space=sflag, size = 0x4, scoped, tag = 'scoped memory for tpu_custom_call.1']
    #allocation7 [shape = 'u8[65536]{0}', space=vmem, size = 0x10000, scoped, tag = 'output window, operand 0, single buffered']
    %7 = vsyncpa [#allocation3], 0
    %8 = vsyncpa [#allocation6], 0
    %9 = vsyncpa [#allocation4], 0
    // Predicated region
    $region2: #{tpu_custom_call.1} parent=1 // pred_check
      _
    $region3: #{tpu_custom_call.1} parent=1 // pred_check_branch
      %11 = sbr.rel (0) target = $region5
    $region4: #{tpu_custom_call.1} parent=1 // pred_region
      %13 = vsyncadd [#allocation3], 0
      %s15 = sshll.u32 %s0, 4
      %s16 = int_to_ptr.hbm [resolvable:$true] %s15
      %s17 = sshll.u32 [#allocation2], 4
      %s18 = int_to_ptr.vmem [resolvable:$true] %s17
      %20 = dma.hbm_to_vmem [thread:$0]  %s16, 64, %s18, [#allocation3]
    $region5: #{tpu_custom_call.1} parent=1 // pred_fallthru
      _
    // Predicated region
    $region6: #{tpu_custom_call.1} parent=1 // pred_check
      _
    $region7: #{tpu_custom_call.1} parent=1 // pred_check_branch
      %22 = sbr.rel (0) target = $region9
    $region8: #{tpu_custom_call.1} parent=1 // pred_region
      %24 = vsyncadd [#allocation6], 0
      %s26 = sshll.u32 %s1, 4
      %s27 = int_to_ptr.hbm [resolvable:$true] %s26
      %s28 = sshll.u32 [#allocation5], 4
      %s29 = int_to_ptr.vmem [resolvable:$true] %s28
      %31 = dma.hbm_to_vmem [thread:$0]  %s27, 64, %s29, [#allocation6]
    $region9: #{tpu_custom_call.1} parent=1 // pred_fallthru
      _
    // Predicated region
    $region10: #{tpu_custom_call.1} parent=1 // pred_check
      _
    $region11: #{tpu_custom_call.1} parent=1 // pred_check_branch
      %33 = sbr.rel (0) target = $region13
    $region12: #{tpu_custom_call.1} parent=1 // pred_region
      %35 = dma.done [#allocation3], 64
    $region13: #{tpu_custom_call.1} parent=1 // pred_fallthru
      _
    // Predicated region
    $region14: #{tpu_custom_call.1} parent=1 // pred_check
      _
    $region15: #{tpu_custom_call.1} parent=1 // pred_check_branch
      %37 = sbr.rel (0) target = $region17
    $region16: #{tpu_custom_call.1} parent=1 // pred_region
      %39 = dma.done [#allocation6], 64
    $region17: #{tpu_custom_call.1} parent=1 // pred_fallthru
      _
    %s40 = smul.u32 0, 128
    %v41 = vlaneseq
    %v42 = vshrl.u32 %v41, 7
    %v43 = vadd.s32 %v42, 8
    %v44 = vadd.s32 %v42, 16
    %v45 = vadd.s32 %v42, 24
    %v46 = vadd.s32 %v42, 32
    %v47 = vadd.s32 %v42, 40
    %v48 = vadd.s32 %v42, 48
    %v49 = vadd.s32 %v42, 56
    %v50 = vadd.s32 %v42, 64
    %v51 = vadd.s32 %v42, 72
    %v52 = vadd.s32 %v42, 80
    %v53 = vadd.s32 %v42, 88
    %v54 = vadd.s32 %v42, 96
    %v55 = vadd.s32 %v42, 104
    %v56 = vadd.s32 %v42, 112
    %v57 = vadd.s32 %v42, 120
    %v58 = vstv %s40
    %v59 = vadd.s32 %v42, %v58
    %v60 = vadd.s32 %v43, %v58
    %v61 = vadd.s32 %v44, %v58
    %v62 = vadd.s32 %v45, %v58
    %v63 = vadd.s32 %v46, %v58
    %v64 = vadd.s32 %v47, %v58
    %v65 = vadd.s32 %v48, %v58
    %v66 = vadd.s32 %v49, %v58
    %v67 = vadd.s32 %v50, %v58
    %v68 = vadd.s32 %v51, %v58
    %v69 = vadd.s32 %v52, %v58
    %v70 = vadd.s32 %v53, %v58
    %v71 = vadd.s32 %v54, %v58
    %v72 = vadd.s32 %v55, %v58
    %v73 = vadd.s32 %v56, %v58
    %v74 = vadd.s32 %v57, %v58
    %v75 = vld [vmem:[#allocation2] sm:$0xf]
    %v76 = vld [vmem:[#allocation5] sm:$0xf]
    %v77 = vperm.slane %v75, 0
    %vm78 = vcmp.eq.s32.totalorder %v59, %v77
    %vm79 = vcmp.eq.s32.totalorder %v60, %v77
    %vm80 = vcmp.eq.s32.totalorder %v61, %v77
    %vm81 = vcmp.eq.s32.totalorder %v62, %v77
    %vm82 = vcmp.eq.s32.totalorder %v63, %v77
    %vm83 = vcmp.eq.s32.totalorder %v64, %v77
    %vm84 = vcmp.eq.s32.totalorder %v65, %v77
    %vm85 = vcmp.eq.s32.totalorder %v66, %v77
    %vm86 = vcmp.eq.s32.totalorder %v67, %v77
    %vm87 = vcmp.eq.s32.totalorder %v68, %v77
    %vm88 = vcmp.eq.s32.totalorder %v69, %v77
    %vm89 = vcmp.eq.s32.totalorder %v70, %v77
    %vm90 = vcmp.eq.s32.totalorder %v71, %v77
    %vm91 = vcmp.eq.s32.totalorder %v72, %v77
    %vm92 = vcmp.eq.s32.totalorder %v73, %v77
    %vm93 = vcmp.eq.s32.totalorder %v74, %v77
    %v94 = vperm.slane %v76, 0
    %v95 = vsel %vm78, %v94, 0.0
    %v96 = vsel %vm79, %v94, 0.0
    %v97 = vsel %vm80, %v94, 0.0
    %v98 = vsel %vm81, %v94, 0.0
    %v99 = vsel %vm82, %v94, 0.0
    %v100 = vsel %vm83, %v94, 0.0
    %v101 = vsel %vm84, %v94, 0.0
    %v102 = vsel %vm85, %v94, 0.0
    %v103 = vsel %vm86, %v94, 0.0
    %v104 = vsel %vm87, %v94, 0.0
    %v105 = vsel %vm88, %v94, 0.0
    %v106 = vsel %vm89, %v94, 0.0
    %v107 = vsel %vm90, %v94, 0.0
    %v108 = vsel %vm91, %v94, 0.0
    %v109 = vsel %vm92, %v94, 0.0
    %v110 = vsel %vm93, %v94, 0.0
    %v111 = vadd.f32 %v95, 0.0
    %v112 = vadd.f32 %v96, 0.0
    %v113 = vadd.f32 %v97, 0.0
    %v114 = vadd.f32 %v98, 0.0
    %v115 = vadd.f32 %v99, 0.0
    %v116 = vadd.f32 %v100, 0.0
    %v117 = vadd.f32 %v101, 0.0
    %v118 = vadd.f32 %v102, 0.0
    %v119 = vadd.f32 %v103, 0.0
    %v120 = vadd.f32 %v104, 0.0
    %v121 = vadd.f32 %v105, 0.0
    %v122 = vadd.f32 %v106, 0.0
    %v123 = vadd.f32 %v107, 0.0
    %v124 = vadd.f32 %v108, 0.0
    %v125 = vadd.f32 %v109, 0.0
    %v126 = vadd.f32 %v110, 0.0
    %v127 = vperm.slane %v75, 1
    %vm128 = vcmp.eq.s32.totalorder %v59, %v127
    %vm129 = vcmp.eq.s32.totalorder %v60, %v127
    %vm130 = vcmp.eq.s32.totalorder %v61, %v127
    %vm131 = vcmp.eq.s32.totalorder %v62, %v127
    %vm132 = vcmp.eq.s32.totalorder %v63, %v127
    %vm133 = vcmp.eq.s32.totalorder %v64, %v127
    %vm134 = vcmp.eq.s32.totalorder %v65, %v127
    %vm135 = vcmp.eq.s32.totalorder %v66, %v127
    %vm136 = vcmp.eq.s32.totalorder %v67, %v127
    %vm137 = vcmp.eq.s32.totalorder %v68, %v127
    %vm138 = vcmp.eq.s32.totalorder %v69, %v127
    %vm139 = vcmp.eq.s32.totalorder %v70, %v127
    %vm140 = vcmp.eq.s32.totalorder %v71, %v127
    %vm141 = vcmp.eq.s32.totalorder %v72, %v127
    %vm142 = vcmp.eq.s32.totalorder %v73, %v127
    %vm143 = vcmp.eq.s32.totalorder %v74, %v127
    %v144 = vperm.slane %v76, 1
    %v145 = vsel %vm128, %v144, 0.0
    %v146 = vsel %vm129, %v144, 0.0
    %v147 = vsel %vm130, %v144, 0.0
    %v148 = vsel %vm131, %v144, 0.0
    %v149 = vsel %vm132, %v144, 0.0
    %v150 = vsel %vm133, %v144, 0.0
    %v151 = vsel %vm134, %v144, 0.0
    %v152 = vsel %vm135, %v144, 0.0
    %v153 = vsel %vm136, %v144, 0.0
    %v154 = vsel %vm137, %v144, 0.0
    %v155 = vsel %vm138, %v144, 0.0
    %v156 = vsel %vm139, %v144, 0.0
    %v157 = vsel %vm140, %v144, 0.0
    %v158 = vsel %vm141, %v144, 0.0
    %v159 = vsel %vm142, %v144, 0.0
    %v160 = vsel %vm143, %v144, 0.0
    %v161 = vadd.f32 %v111, %v145
    %v162 = vadd.f32 %v112, %v146
    %v163 = vadd.f32 %v113, %v147
    %v164 = vadd.f32 %v114, %v148
    %v165 = vadd.f32 %v115, %v149
    %v166 = vadd.f32 %v116, %v150
    %v167 = vadd.f32 %v117, %v151
    %v168 = vadd.f32 %v118, %v152
    %v169 = vadd.f32 %v119, %v153
    %v170 = vadd.f32 %v120, %v154
    %v171 = vadd.f32 %v121, %v155
    %v172 = vadd.f32 %v122, %v156
    %v173 = vadd.f32 %v123, %v157
    %v174 = vadd.f32 %v124, %v158
    %v175 = vadd.f32 %v125, %v159
    %v176 = vadd.f32 %v126, %v160
    %v177 = vperm.slane %v75, 2
    %vm178 = vcmp.eq.s32.totalorder %v59, %v177
    %vm179 = vcmp.eq.s32.totalorder %v60, %v177
    %vm180 = vcmp.eq.s32.totalorder %v61, %v177
    %vm181 = vcmp.eq.s32.totalorder %v62, %v177
    %vm182 = vcmp.eq.s32.totalorder %v63, %v177
    %vm183 = vcmp.eq.s32.totalorder %v64, %v177
    %vm184 = vcmp.eq.s32.totalorder %v65, %v177
    %vm185 = vcmp.eq.s32.totalorder %v66, %v177
    %vm186 = vcmp.eq.s32.totalorder %v67, %v177
    %vm187 = vcmp.eq.s32.totalorder %v68, %v177
    %vm188 = vcmp.eq.s32.totalorder %v69, %v177
    %vm189 = vcmp.eq.s32.totalorder %v70, %v177
    %vm190 = vcmp.eq.s32.totalorder %v71, %v177
    %vm191 = vcmp.eq.s32.totalorder %v72, %v177
    %vm192 = vcmp.eq.s32.totalorder %v73, %v177
    %vm193 = vcmp.eq.s32.totalorder %v74, %v177
    %v194 = vperm.slane %v76, 2
    %v195 = vsel %vm178, %v194, 0.0
    %v196 = vsel %vm179, %v194, 0.0
    %v197 = vsel %vm180, %v194, 0.0
    %v198 = vsel %vm181, %v194, 0.0
    %v199 = vsel %vm182, %v194, 0.0
    %v200 = vsel %vm183, %v194, 0.0
    %v201 = vsel %vm184, %v194, 0.0
    %v202 = vsel %vm185, %v194, 0.0
    %v203 = vsel %vm186, %v194, 0.0
    %v204 = vsel %vm187, %v194, 0.0
    %v205 = vsel %vm188, %v194, 0.0
    %v206 = vsel %vm189, %v194, 0.0
    %v207 = vsel %vm190, %v194, 0.0
    %v208 = vsel %vm191, %v194, 0.0
    %v209 = vsel %vm192, %v194, 0.0
    %v210 = vsel %vm193, %v194, 0.0
    %v211 = vadd.f32 %v161, %v195
    %v212 = vadd.f32 %v162, %v196
    %v213 = vadd.f32 %v163, %v197
    %v214 = vadd.f32 %v164, %v198
    %v215 = vadd.f32 %v165, %v199
    %v216 = vadd.f32 %v166, %v200
    %v217 = vadd.f32 %v167, %v201
    %v218 = vadd.f32 %v168, %v202
    %v219 = vadd.f32 %v169, %v203
    %v220 = vadd.f32 %v170, %v204
    %v221 = vadd.f32 %v171, %v205
    %v222 = vadd.f32 %v172, %v206
    %v223 = vadd.f32 %v173, %v207
    %v224 = vadd.f32 %v174, %v208
    %v225 = vadd.f32 %v175, %v209
    %v226 = vadd.f32 %v176, %v210
    %v227 = vperm.slane %v75, 3
    %vm228 = vcmp.eq.s32.totalorder %v59, %v227
    %vm229 = vcmp.eq.s32.totalorder %v60, %v227
    %vm230 = vcmp.eq.s32.totalorder %v61, %v227
    %vm231 = vcmp.eq.s32.totalorder %v62, %v227
    %vm232 = vcmp.eq.s32.totalorder %v63, %v227
    %vm233 = vcmp.eq.s32.totalorder %v64, %v227
    %vm234 = vcmp.eq.s32.totalorder %v65, %v227
    %vm235 = vcmp.eq.s32.totalorder %v66, %v227
    %vm236 = vcmp.eq.s32.totalorder %v67, %v227
    %vm237 = vcmp.eq.s32.totalorder %v68, %v227
    %vm238 = vcmp.eq.s32.totalorder %v69, %v227
    %vm239 = vcmp.eq.s32.totalorder %v70, %v227
    %vm240 = vcmp.eq.s32.totalorder %v71, %v227
    %vm241 = vcmp.eq.s32.totalorder %v72, %v227
    %vm242 = vcmp.eq.s32.totalorder %v73, %v227
    %vm243 = vcmp.eq.s32.totalorder %v74, %v227
    %v244 = vperm.slane %v76, 3
    %v245 = vsel %vm228, %v244, 0.0
    %v246 = vsel %vm229, %v244, 0.0
    %v247 = vsel %vm230, %v244, 0.0
    %v248 = vsel %vm231, %v244, 0.0
    %v249 = vsel %vm232, %v244, 0.0
    %v250 = vsel %vm233, %v244, 0.0
    %v251 = vsel %vm234, %v244, 0.0
    %v252 = vsel %vm235, %v244, 0.0
    %v253 = vsel %vm236, %v244, 0.0
    %v254 = vsel %vm237, %v244, 0.0
    %v255 = vsel %vm238, %v244, 0.0
    %v256 = vsel %vm239, %v244, 0.0
    %v257 = vsel %vm240, %v244, 0.0
    %v258 = vsel %vm241, %v244, 0.0
    %v259 = vsel %vm242, %v244, 0.0
    %v260 = vsel %vm243, %v244, 0.0
    %v261 = vadd.f32 %v211, %v245
    %v262 = vadd.f32 %v212, %v246
    %v263 = vadd.f32 %v213, %v247
    %v264 = vadd.f32 %v214, %v248
    %v265 = vadd.f32 %v215, %v249
    %v266 = vadd.f32 %v216, %v250
    %v267 = vadd.f32 %v217, %v251
    %v268 = vadd.f32 %v218, %v252
    %v269 = vadd.f32 %v219, %v253
    %v270 = vadd.f32 %v220, %v254
    %v271 = vadd.f32 %v221, %v255
    %v272 = vadd.f32 %v222, %v256
    %v273 = vadd.f32 %v223, %v257
    %v274 = vadd.f32 %v224, %v258
    %v275 = vadd.f32 %v225, %v259
    %v276 = vadd.f32 %v226, %v260
    %277 = vst [vmem:[#allocation7] sm:$0xff] %v261
    %278 = vst [vmem:[#allocation7 + $0x8] sm:$0xff] %v262
    %279 = vst [vmem:[#allocation7 + $0x10] sm:$0xff] %v263
    %280 = vst [vmem:[#allocation7 + $0x18] sm:$0xff] %v264
    %281 = vst [vmem:[#allocation7 + $0x20] sm:$0xff] %v265
    %282 = vst [vmem:[#allocation7 + $0x28] sm:$0xff] %v266
    %283 = vst [vmem:[#allocation7 + $0x30] sm:$0xff] %v267
    %284 = vst [vmem:[#allocation7 + $0x38] sm:$0xff] %v268
    %285 = vst [vmem:[#allocation7 + $0x40] sm:$0xff] %v269
    %286 = vst [vmem:[#allocation7 + $0x48] sm:$0xff] %v270
    %287 = vst [vmem:[#allocation7 + $0x50] sm:$0xff] %v271
    %288 = vst [vmem:[#allocation7 + $0x58] sm:$0xff] %v272
    %289 = vst [vmem:[#allocation7 + $0x60] sm:$0xff] %v273
    %290 = vst [vmem:[#allocation7 + $0x68] sm:$0xff] %v274
    %291 = vst [vmem:[#allocation7 + $0x70] sm:$0xff] %v275
    %292 = vst [vmem:[#allocation7 + $0x78] sm:$0xff] %v276
    // Predicated region
    $region18: #{tpu_custom_call.1} parent=1 // pred_check
      _
    $region19: #{tpu_custom_call.1} parent=1 // pred_check_branch
      %294 = sbr.rel (0) target = $region21
    $region20: #{tpu_custom_call.1} parent=1 // pred_region
      %296 = vsyncadd [#allocation4], 0
      %s297 = sshll.u32 [#allocation7], 4
      %s298 = int_to_ptr.vmem [resolvable:$true] %s297
      %s299 = sshll.u32 %s2, 4
      %s300 = int_to_ptr.hbm [resolvable:$true] %s299
      %305 = dma.vmem_to_hbm [thread:$0]  %s298, 2048, %s300, [#allocation4], 128, 128, 8
    $region21: #{tpu_custom_call.1} parent=1 // pred_fallthru
      _
    // Predicated region
    $region22: #{tpu_custom_call.1} parent=1 // pred_check
      _
    $region23: #{tpu_custom_call.1} parent=1 // pred_check_branch
      %307 = sbr.rel (0) target = $region25
    $region24: #{tpu_custom_call.1} parent=1 // pred_region
      %309 = dma.done [#allocation4], 2048
    $region25: #{tpu_custom_call.1} parent=1 // pred_fallthru
      _
    %310 = vsyncpa [#allocation3], 1
    %311 = vsyncpa [#allocation6], 1
    %312 = vsyncpa [#allocation4], 1

</llo_original>
